<compile_context>
chip_gen: v7x
topology: tpu7x:2x2x1
jax: 0.10.0
libtpu: 0.0.40
codegen_flags: <defaults>
</compile_context>

<pallas_src>
import jax
import jax.numpy as jnp
from jax import lax
from jax.experimental import pallas as pl
from jax.experimental.pallas import tpu as pltpu

TEMPERATURE = 0.1
LAMBDA_CS_REG = 0.5
_INV_T = 1.0 / TEMPERATURE

# Use the single fused kernel while inputs + stacked operands + exp slab fit
# comfortably under the scoped-VMEM default on all generations.
_FUSED_VMEM_BUDGET = 20 * 1024 * 1024

# Tile caps for the large-batch multi-kernel path.
_PREP_BLOCK_CAP = 256     # batch rows per prep tile
_ANCHOR_BLOCK_CAP = 256   # rows of the stacked (2B, D) anchor matrix per tile
_TARGET_BLOCK_CAP = 512   # rows of the stacked (4B, D) target matrix per tile


def _l2_normalize(x):
    # torch.nn.functional.normalize(p=2, dim=1, eps=1e-12)
    norm = jnp.sqrt(jnp.sum(x * x, axis=1, keepdims=True))
    return x / jnp.maximum(norm, 1e-12)


def _pick_block(n, cap):
    """Largest block <= cap that is a multiple of 8 and divides n, else n."""
    if n <= cap:
        return n
    for c in range(cap - cap % 8, 7, -8):
        if n % c == 0:
            return c
    return n


def _row_dots(E, K, Et, Kt):
    """Per-row ("diagonal") dot products needed by positives + regularizer."""
    d_ek = jnp.sum(E * K, axis=1, keepdims=True)
    d_eet = jnp.sum(E * Et, axis=1, keepdims=True)
    d_ekt = jnp.sum(E * Kt, axis=1, keepdims=True)
    d_ket = jnp.sum(K * Et, axis=1, keepdims=True)
    d_kkt = jnp.sum(K * Kt, axis=1, keepdims=True)
    return d_ek, d_eet, d_ekt, d_ket, d_kkt


def _positives(d_ek, d_eet, d_ekt, d_ket, d_kkt):
    pos_e = (jnp.exp(d_eet * _INV_T) + jnp.exp(d_ekt * _INV_T)
             + jnp.exp(d_ek * _INV_T))
    pos_k = (jnp.exp(d_ket * _INV_T) + jnp.exp(d_kkt * _INV_T)
             + jnp.exp(d_ek * _INV_T))
    return pos_e, pos_k


def _cs_reg_rows(r, d_ek, d_eet, d_ekt, d_ket, d_kkt):
    # Closed form of ||Et - (r E + (1-r) K)|| + ||Kt - ((1-r) E + r K)|| using
    # per-row dots; all rows are unit norm after normalization.
    omr = 1.0 - r
    sq_e = (1.0 + r * r + omr * omr + 2.0 * r * omr * d_ek
            - 2.0 * r * d_eet - 2.0 * omr * d_ket)
    sq_k = (1.0 + omr * omr + r * r + 2.0 * r * omr * d_ek
            - 2.0 * omr * d_ekt - 2.0 * r * d_kkt)
    return (jnp.sqrt(jnp.maximum(sq_e, 0.0))
            + jnp.sqrt(jnp.maximum(sq_k, 0.0)))


# --------------------------------------------------------------------------
# Fast path: one fused gridless kernel.
# --------------------------------------------------------------------------
def _fused_kernel(eng_ref, etok_ref, ktoe_ref, kor_ref, ratio_ref,
                  cont_ref, csreg_ref, tot_ref, a_scr, t_scr):
    E = _l2_normalize(eng_ref[...].astype(jnp.float32))
    Et = _l2_normalize(etok_ref[...].astype(jnp.float32))
    Kt = _l2_normalize(ktoe_ref[...].astype(jnp.float32))
    K = _l2_normalize(kor_ref[...].astype(jnp.float32))
    r = ratio_ref[...].astype(jnp.float32)
    B = E.shape[0]

    # Stacked MXU operands in VMEM scratch: anchors A=[E;K], targets
    # T=[E;K;Et;Kt].  Kept in f32 here: the problem is tiny so MXU throughput
    # is irrelevant and f32 keeps the loss numerically close to the reference.
    a_scr[:B, :] = E
    a_scr[B:, :] = K
    t_scr[:B, :] = E
    t_scr[B:2 * B, :] = K
    t_scr[2 * B:3 * B, :] = Et
    t_scr[3 * B:, :] = Kt

    # Fused (2B, 4B) similarity slab; contraction on the last dim of both
    # operands (no transposes materialized), f32 accumulation.
    s = lax.dot_general(a_scr[...], t_scr[...],
                        dimension_numbers=(((1,), (1,)), ((), ())),
                        preferred_element_type=jnp.float32) * _INV_T

    # Exclude only the anchor's own self-similarity (global row == global col)
    # so the row-sum equals the reference denominator (positives + negatives).
    # TODO(synk): plain exp-sum, not log-sum-exp; safe for T=0.1 with
    # unit-norm rows (exp <= e^10 in f32), revisit for much lower temperatures.
    row_g = lax.broadcasted_iota(jnp.int32, s.shape, 0)
    col_g = lax.broadcasted_iota(jnp.int32, s.shape, 1)
    denom = jnp.sum(jnp.where(row_g == col_g, 0.0, jnp.exp(s)),
                    axis=1, keepdims=True)                       # (2B, 1)

    d = _row_dots(E, K, Et, Kt)
    pos_e, pos_k = _positives(*d)

    # -log(pos / denom) = log(denom) - log(pos)
    loss_e = jnp.log(denom[:B, :]) - jnp.log(pos_e)
    loss_k = jnp.log(denom[B:, :]) - jnp.log(pos_k)
    contrastive = (jnp.sum(loss_e) + jnp.sum(loss_k)) / (2.0 * B)

    cs_reg = jnp.sum(_cs_reg_rows(r, *d)) / B

    cont_ref[0, 0] = contrastive
    csreg_ref[0, 0] = cs_reg
    tot_ref[0, 0] = contrastive + LAMBDA_CS_REG * cs_reg


def _fused_path(english, etok, ktoe, korean, ratios):
    B, D = english.shape
    vmem = pl.BlockSpec(memory_space=pltpu.VMEM)
    smem = pl.BlockSpec(memory_space=pltpu.SMEM)
    return pl.pallas_call(
        _fused_kernel,
        out_shape=(
            jax.ShapeDtypeStruct((1, 1), jnp.float32),
            jax.ShapeDtypeStruct((1, 1), jnp.float32),
            jax.ShapeDtypeStruct((1, 1), jnp.float32),
        ),
        in_specs=[vmem, vmem, vmem, vmem, vmem],
        out_specs=(smem, smem, smem),
        scratch_shapes=[pltpu.VMEM((2 * B, D), jnp.float32),
                        pltpu.VMEM((4 * B, D), jnp.float32)],
    )(english, etok, ktoe, korean, ratios)


# --------------------------------------------------------------------------
# Large-batch path: batch-tiled prep + streamed gram + finalize.
# --------------------------------------------------------------------------
def _prep_kernel(eng_ref, etok_ref, ktoe_ref, kor_ref, ratio_ref,
                 en_ref, kn_ref, etn_ref, ktn_ref,
                 pos_e_ref, pos_k_ref, reg_ref):
    E = _l2_normalize(eng_ref[...].astype(jnp.float32))
    Et = _l2_normalize(etok_ref[...].astype(jnp.float32))
    Kt = _l2_normalize(ktoe_ref[...].astype(jnp.float32))
    K = _l2_normalize(kor_ref[...].astype(jnp.float32))
    r = ratio_ref[...].astype(jnp.float32)

    # bf16 MXU operands for the big gram (f32 accumulation happens there).
    en_ref[...] = E.astype(jnp.bfloat16)
    kn_ref[...] = K.astype(jnp.bfloat16)
    etn_ref[...] = Et.astype(jnp.bfloat16)
    ktn_ref[...] = Kt.astype(jnp.bfloat16)

    d = _row_dots(E, K, Et, Kt)
    pos_e, pos_k = _positives(*d)
    pos_e_ref[...] = pos_e
    pos_k_ref[...] = pos_k
    reg_ref[...] = _cs_reg_rows(r, *d)


def _gram_loss_kernel(a_ref, t_ref, pos_ref, loss_ref, acc_ref):
    j = pl.program_id(1)

    @pl.when(j == 0)
    def _():
        acc_ref[...] = jnp.zeros_like(acc_ref)

    ta = a_ref.shape[0]
    tt = t_ref.shape[0]

    # bf16 tile dot with f32 accumulation, contraction on last dims.
    s = lax.dot_general(a_ref[...], t_ref[...],
                        dimension_numbers=(((1,), (1,)), ((), ())),
                        preferred_element_type=jnp.float32) * _INV_T

    # Mask only the anchor's own self-similarity in the stacked target, then
    # stream-accumulate row sums (only one (ta, tt) slab live at a time).
    row_g = pl.program_id(0) * ta + lax.broadcasted_iota(jnp.int32, (ta, tt), 0)
    col_g = j * tt + lax.broadcasted_iota(jnp.int32, (ta, tt), 1)
    p = jnp.where(row_g == col_g, 0.0, jnp.exp(s))
    acc_ref[...] += jnp.sum(p, axis=1, keepdims=True)

    @pl.when(j == pl.num_programs(1) - 1)
    def _():
        loss_ref[...] = jnp.log(acc_ref[...]) - jnp.log(pos_ref[...])


def _finalize_kernel(loss_ref, reg_ref, cont_ref, csreg_ref, tot_ref):
    loss_rows = loss_ref[...]                       # (2B, 1)
    reg_rows = reg_ref[...]                         # (B, 1)
    contrastive = jnp.sum(loss_rows) / loss_rows.shape[0]
    cs_reg = jnp.sum(reg_rows) / reg_rows.shape[0]
    cont_ref[0, 0] = contrastive
    csreg_ref[0, 0] = cs_reg
    tot_ref[0, 0] = contrastive + LAMBDA_CS_REG * cs_reg


def _tiled_path(english, etok, ktoe, korean, ratios):
    B, D = english.shape
    vmem = pl.BlockSpec(memory_space=pltpu.VMEM)
    smem = pl.BlockSpec(memory_space=pltpu.SMEM)

    # ---- 1) prep: normalize, bf16 cast, per-row positives + regularizer ----
    tb = _pick_block(B, _PREP_BLOCK_CAP)
    n_b = B // tb
    row_spec = pl.BlockSpec((tb, D), lambda i: (i, 0))
    col_spec = pl.BlockSpec((tb, 1), lambda i: (i, 0))
    en, kn, etn, ktn, pos_e, pos_k, reg_rows = pl.pallas_call(
        _prep_kernel,
        out_shape=(
            jax.ShapeDtypeStruct((B, D), jnp.bfloat16),
            jax.ShapeDtypeStruct((B, D), jnp.bfloat16),
            jax.ShapeDtypeStruct((B, D), jnp.bfloat16),
            jax.ShapeDtypeStruct((B, D), jnp.bfloat16),
            jax.ShapeDtypeStruct((B, 1), jnp.float32),
            jax.ShapeDtypeStruct((B, 1), jnp.float32),
            jax.ShapeDtypeStruct((B, 1), jnp.float32),
        ),
        grid_spec=pltpu.PrefetchScalarGridSpec(
            num_scalar_prefetch=0,
            grid=(n_b,),
            in_specs=[row_spec, row_spec, row_spec, row_spec, col_spec],
            out_specs=(row_spec, row_spec, row_spec, row_spec,
                       col_spec, col_spec, col_spec),
        ),
        compiler_params=pltpu.CompilerParams(
            dimension_semantics=("parallel",)),
    )(english, etok, ktoe, korean, ratios)

    # Layout plumbing only (HBM concatenates): stacked anchors A=[E;K] and
    # targets T=[E;K;Et;Kt] so the gram kernel streams one fused lane-dense
    # slab instead of 8 separate BxB products.
    a_bf = jnp.concatenate([en, kn], axis=0)             # (2B, D)
    t_bf = jnp.concatenate([en, kn, etn, ktn], axis=0)   # (4B, D)
    pos = jnp.concatenate([pos_e, pos_k], axis=0)        # (2B, 1)

    # ---- 2) gram: streamed row-sums of the exp-similarity slab ----
    ta = _pick_block(2 * B, _ANCHOR_BLOCK_CAP)
    tt = _pick_block(4 * B, _TARGET_BLOCK_CAP)
    n_a = (2 * B) // ta
    n_t = (4 * B) // tt
    loss_rows = pl.pallas_call(
        _gram_loss_kernel,
        out_shape=jax.ShapeDtypeStruct((2 * B, 1), jnp.float32),
        grid_spec=pltpu.PrefetchScalarGridSpec(
            num_scalar_prefetch=0,
            grid=(n_a, n_t),
            in_specs=[
                pl.BlockSpec((ta, D), lambda i, j: (i, 0)),   # anchors
                pl.BlockSpec((tt, D), lambda i, j: (j, 0)),   # targets
                pl.BlockSpec((ta, 1), lambda i, j: (i, 0)),   # positive sums
            ],
            out_specs=pl.BlockSpec((ta, 1), lambda i, j: (i, 0)),
            scratch_shapes=[pltpu.VMEM((ta, 1), jnp.float32)],
        ),
        compiler_params=pltpu.CompilerParams(
            dimension_semantics=("parallel", "arbitrary")),
    )(a_bf, t_bf, pos)

    # ---- 3) finalize: scalar loss components ----
    return pl.pallas_call(
        _finalize_kernel,
        out_shape=(
            jax.ShapeDtypeStruct((1, 1), jnp.float32),
            jax.ShapeDtypeStruct((1, 1), jnp.float32),
            jax.ShapeDtypeStruct((1, 1), jnp.float32),
        ),
        in_specs=[vmem, vmem],
        out_specs=(smem, smem, smem),
    )(loss_rows, reg_rows)


def _use_fused(B, D):
    bytes_needed = (4 * B * D * 4                 # normalized f32 inputs
                    + 6 * B * D * 4               # stacked A/T f32 scratch
                    + 2 * (2 * B) * (4 * B) * 4)  # similarity + exp slab
    return bytes_needed <= _FUSED_VMEM_BUDGET


@jax.jit
def refined_code_switch_loss(embeddings_dict, cs_ratios):
    english = embeddings_dict["english"]
    etok = embeddings_dict["etok"]
    ktoe = embeddings_dict["ktoe"]
    korean = embeddings_dict["korean"]
    B, D = english.shape
    ratios = cs_ratios.reshape(B, 1).astype(jnp.float32)

    if _use_fused(B, D):
        cont, csreg, tot = _fused_path(english, etok, ktoe, korean, ratios)
    else:
        cont, csreg, tot = _tiled_path(english, etok, ktoe, korean, ratios)

    total_loss = tot[0, 0]
    # Device scalars (0-d arrays), not Python floats: .item() would force a
    # blocking device->host transfer per component per step.
    components = {
        "contrastive_loss": cont[0, 0],
        "cs_reg_loss": csreg[0, 0],
        "total_loss": tot[0, 0],
    }
    return total_loss, components


if __name__ == "__main__":
    key = jax.random.PRNGKey(0)
    B, D = 8, 128   # lane-dense demo shapes: B multiple of 8, D multiple of 128
    k1, k2, k3, k4, k5 = jax.random.split(key, 5)
    embeddings = {
        "english": jax.random.normal(k1, (B, D), dtype=jnp.float32),
        "etok": jax.random.normal(k2, (B, D), dtype=jnp.float32),
        "ktoe": jax.random.normal(k3, (B, D), dtype=jnp.float32),
        "korean": jax.random.normal(k4, (B, D), dtype=jnp.float32),
    }
    cs_ratios = jax.random.uniform(k5, (B,), dtype=jnp.float32)

    total_loss, components = refined_code_switch_loss(embeddings, cs_ratios)
    jax.block_until_ready(total_loss)
    print("KERNEL_OK")
</pallas_src>

<mosaic_0001>
module attributes {stable_mosaic.version = 11 : i64} {
  func.func @_fused_kernel(%arg0: memref<8x128xf32, #tpu.memory_space<vmem>>, %arg1: memref<8x128xf32, #tpu.memory_space<vmem>>, %arg2: memref<8x128xf32, #tpu.memory_space<vmem>>, %arg3: memref<8x128xf32, #tpu.memory_space<vmem>>, %arg4: memref<8x1xf32, #tpu.memory_space<vmem>>, %arg5: memref<1x1xf32, #tpu.memory_space<smem>>, %arg6: memref<1x1xf32, #tpu.memory_space<smem>>, %arg7: memref<1x1xf32, #tpu.memory_space<smem>>, %arg8: memref<16x128xf32, #tpu.memory_space<vmem>>, %arg9: memref<32x128xf32, #tpu.memory_space<vmem>>) attributes {dimension_semantics = [], scalar_prefetch = 0 : i64, scratch_operands = 2 : i64, tpu.core_type = #tpu.core_type<tc>} {
    %c0 = arith.constant 0 : index
    %c0_0 = arith.constant 0 : index
    %0 = vector.load %arg0[%c0, %c0_0] : memref<8x128xf32, #tpu.memory_space<vmem>>, vector<8x128xf32>
    %1 = arith.mulf %0, %0 : vector<8x128xf32>
    %cst = arith.constant dense<0.000000e+00> : vector<8xf32>
    %2 = vector.multi_reduction <add>, %1, %cst [1] : vector<8x128xf32> to vector<8xf32>
    %3 = vector.shape_cast %2 : vector<8xf32> to vector<8x1xf32>
    %4 = math.sqrt %3 : vector<8x1xf32>
    %cst_1 = arith.constant 9.99999996E-13 : f32
    %5 = vector.broadcast %cst_1 : f32 to vector<8x1xf32>
    %6 = arith.maximumf %4, %5 : vector<8x1xf32>
    %7 = vector.broadcast %6 : vector<8x1xf32> to vector<8x128xf32>
    %8 = arith.divf %0, %7 : vector<8x128xf32>
    %c0_2 = arith.constant 0 : index
    %c0_3 = arith.constant 0 : index
    %9 = vector.load %arg1[%c0_2, %c0_3] : memref<8x128xf32, #tpu.memory_space<vmem>>, vector<8x128xf32>
    %10 = arith.mulf %9, %9 : vector<8x128xf32>
    %cst_4 = arith.constant dense<0.000000e+00> : vector<8xf32>
    %11 = vector.multi_reduction <add>, %10, %cst_4 [1] : vector<8x128xf32> to vector<8xf32>
    %12 = vector.shape_cast %11 : vector<8xf32> to vector<8x1xf32>
    %13 = math.sqrt %12 : vector<8x1xf32>
    %cst_5 = arith.constant 9.99999996E-13 : f32
    %14 = vector.broadcast %cst_5 : f32 to vector<8x1xf32>
    %15 = arith.maximumf %13, %14 : vector<8x1xf32>
    %16 = vector.broadcast %15 : vector<8x1xf32> to vector<8x128xf32>
    %17 = arith.divf %9, %16 : vector<8x128xf32>
    %c0_6 = arith.constant 0 : index
    %c0_7 = arith.constant 0 : index
    %18 = vector.load %arg2[%c0_6, %c0_7] : memref<8x128xf32, #tpu.memory_space<vmem>>, vector<8x128xf32>
    %19 = arith.mulf %18, %18 : vector<8x128xf32>
    %cst_8 = arith.constant dense<0.000000e+00> : vector<8xf32>
    %20 = vector.multi_reduction <add>, %19, %cst_8 [1] : vector<8x128xf32> to vector<8xf32>
    %21 = vector.shape_cast %20 : vector<8xf32> to vector<8x1xf32>
    %22 = math.sqrt %21 : vector<8x1xf32>
    %cst_9 = arith.constant 9.99999996E-13 : f32
    %23 = vector.broadcast %cst_9 : f32 to vector<8x1xf32>
    %24 = arith.maximumf %22, %23 : vector<8x1xf32>
    %25 = vector.broadcast %24 : vector<8x1xf32> to vector<8x128xf32>
    %26 = arith.divf %18, %25 : vector<8x128xf32>
    %c0_10 = arith.constant 0 : index
    %c0_11 = arith.constant 0 : index
    %27 = vector.load %arg3[%c0_10, %c0_11] : memref<8x128xf32, #tpu.memory_space<vmem>>, vector<8x128xf32>
    %28 = arith.mulf %27, %27 : vector<8x128xf32>
    %cst_12 = arith.constant dense<0.000000e+00> : vector<8xf32>
    %29 = vector.multi_reduction <add>, %28, %cst_12 [1] : vector<8x128xf32> to vector<8xf32>
    %30 = vector.shape_cast %29 : vector<8xf32> to vector<8x1xf32>
    %31 = math.sqrt %30 : vector<8x1xf32>
    %cst_13 = arith.constant 9.99999996E-13 : f32
    %32 = vector.broadcast %cst_13 : f32 to vector<8x1xf32>
    %33 = arith.maximumf %31, %32 : vector<8x1xf32>
    %34 = vector.broadcast %33 : vector<8x1xf32> to vector<8x128xf32>
    %35 = arith.divf %27, %34 : vector<8x128xf32>
    %c0_14 = arith.constant 0 : index
    %c0_15 = arith.constant 0 : index
    %36 = vector.load %arg4[%c0_14, %c0_15] : memref<8x1xf32, #tpu.memory_space<vmem>>, vector<8x1xf32>
    %c0_16 = arith.constant 0 : index
    %c0_17 = arith.constant 0 : index
    %37 = vector.load %arg8[%c0_16, %c0_17] : memref<16x128xf32, #tpu.memory_space<vmem>>, vector<8x128xf32>
    tpu.vector_store %arg8[%c0_16, %c0_17], %8 {strides = array<i32>} : memref<16x128xf32, #tpu.memory_space<vmem>>, vector<8x128xf32>,
    %c8 = arith.constant 8 : index
    %c0_18 = arith.constant 0 : index
    %38 = vector.load %arg8[%c8, %c0_18] : memref<16x128xf32, #tpu.memory_space<vmem>>, vector<8x128xf32>
    tpu.vector_store %arg8[%c8, %c0_18], %35 {strides = array<i32>} : memref<16x128xf32, #tpu.memory_space<vmem>>, vector<8x128xf32>,
    %c0_19 = arith.constant 0 : index
    %c0_20 = arith.constant 0 : index
    %39 = vector.load %arg9[%c0_19, %c0_20] : memref<32x128xf32, #tpu.memory_space<vmem>>, vector<8x128xf32>
    tpu.vector_store %arg9[%c0_19, %c0_20], %8 {strides = array<i32>} : memref<32x128xf32, #tpu.memory_space<vmem>>, vector<8x128xf32>,
    %c8_21 = arith.constant 8 : index
    %c0_22 = arith.constant 0 : index
    %40 = vector.load %arg9[%c8_21, %c0_22] : memref<32x128xf32, #tpu.memory_space<vmem>>, vector<8x128xf32>
    tpu.vector_store %arg9[%c8_21, %c0_22], %35 {strides = array<i32>} : memref<32x128xf32, #tpu.memory_space<vmem>>, vector<8x128xf32>,
    %c16 = arith.constant 16 : index
    %c0_23 = arith.constant 0 : index
    %41 = vector.load %arg9[%c16, %c0_23] : memref<32x128xf32, #tpu.memory_space<vmem>>, vector<8x128xf32>
    tpu.vector_store %arg9[%c16, %c0_23], %17 {strides = array<i32>} : memref<32x128xf32, #tpu.memory_space<vmem>>, vector<8x128xf32>,
    %c24 = arith.constant 24 : index
    %c0_24 = arith.constant 0 : index
    %42 = vector.load %arg9[%c24, %c0_24] : memref<32x128xf32, #tpu.memory_space<vmem>>, vector<8x128xf32>
    tpu.vector_store %arg9[%c24, %c0_24], %26 {strides = array<i32>} : memref<32x128xf32, #tpu.memory_space<vmem>>, vector<8x128xf32>,
    %c0_25 = arith.constant 0 : index
    %c0_26 = arith.constant 0 : index
    %43 = vector.load %arg8[%c0_25, %c0_26] : memref<16x128xf32, #tpu.memory_space<vmem>>, vector<16x128xf32>
    %c0_27 = arith.constant 0 : index
    %c0_28 = arith.constant 0 : index
    %44 = vector.load %arg9[%c0_27, %c0_28] : memref<32x128xf32, #tpu.memory_space<vmem>>, vector<32x128xf32>
    %cst_29 = arith.constant dense<0.000000e+00> : vector<16x32xf32>
    %45 = tpu.matmul %43, %44, %cst_29 {dimension_numbers = #tpu.dot_dimension_numbers<[1], [1], [0], [0], [0, 0, 1, 0], [], []>} : vector<16x128xf32>, vector<32x128xf32>, vector<16x32xf32> -> vector<16x32xf32>
    %cst_30 = arith.constant 1.000000e+01 : f32
    %46 = vector.broadcast %cst_30 : f32 to vector<16x32xf32>
    %47 = arith.mulf %45, %46 : vector<16x32xf32>
    %48 = tpu.iota {dimensions = array<i32: 0>} : vector<16x32xi32>
    %49 = tpu.iota {dimensions = array<i32: 1>} : vector<16x32xi32>
    %50 = arith.cmpi eq, %48, %49 : vector<16x32xi32>
    %51 = math.exp %47 : vector<16x32xf32>
    %cst_31 = arith.constant 0.000000e+00 : f32
    %52 = vector.broadcast %cst_31 : f32 to vector<16x32xf32>
    %53 = arith.select %50, %52, %51 : vector<16x32xi1>, vector<16x32xf32>
    %cst_32 = arith.constant dense<0.000000e+00> : vector<16xf32>
    %54 = vector.multi_reduction <add>, %53, %cst_32 [1] : vector<16x32xf32> to vector<16xf32>
    %55 = vector.shape_cast %54 : vector<16xf32> to vector<16x1xf32>
    %56 = arith.mulf %8, %35 : vector<8x128xf32>
    %cst_33 = arith.constant dense<0.000000e+00> : vector<8xf32>
    %57 = vector.multi_reduction <add>, %56, %cst_33 [1] : vector<8x128xf32> to vector<8xf32>
    %58 = vector.shape_cast %57 : vector<8xf32> to vector<8x1xf32>
    %59 = arith.mulf %8, %17 : vector<8x128xf32>
    %cst_34 = arith.constant dense<0.000000e+00> : vector<8xf32>
    %60 = vector.multi_reduction <add>, %59, %cst_34 [1] : vector<8x128xf32> to vector<8xf32>
    %61 = vector.shape_cast %60 : vector<8xf32> to vector<8x1xf32>
    %62 = arith.mulf %8, %26 : vector<8x128xf32>
    %cst_35 = arith.constant dense<0.000000e+00> : vector<8xf32>
    %63 = vector.multi_reduction <add>, %62, %cst_35 [1] : vector<8x128xf32> to vector<8xf32>
    %64 = vector.shape_cast %63 : vector<8xf32> to vector<8x1xf32>
    %65 = arith.mulf %35, %17 : vector<8x128xf32>
    %cst_36 = arith.constant dense<0.000000e+00> : vector<8xf32>
    %66 = vector.multi_reduction <add>, %65, %cst_36 [1] : vector<8x128xf32> to vector<8xf32>
    %67 = vector.shape_cast %66 : vector<8xf32> to vector<8x1xf32>
    %68 = arith.mulf %35, %26 : vector<8x128xf32>
    %cst_37 = arith.constant dense<0.000000e+00> : vector<8xf32>
    %69 = vector.multi_reduction <add>, %68, %cst_37 [1] : vector<8x128xf32> to vector<8xf32>
    %70 = vector.shape_cast %69 : vector<8xf32> to vector<8x1xf32>
    %cst_38 = arith.constant 1.000000e+01 : f32
    %71 = vector.broadcast %cst_38 : f32 to vector<8x1xf32>
    %72 = arith.mulf %61, %71 : vector<8x1xf32>
    %73 = math.exp %72 : vector<8x1xf32>
    %cst_39 = arith.constant 1.000000e+01 : f32
    %74 = vector.broadcast %cst_39 : f32 to vector<8x1xf32>
    %75 = arith.mulf %64, %74 : vector<8x1xf32>
    %76 = math.exp %75 : vector<8x1xf32>
    %77 = arith.addf %73, %76 : vector<8x1xf32>
    %cst_40 = arith.constant 1.000000e+01 : f32
    %78 = vector.broadcast %cst_40 : f32 to vector<8x1xf32>
    %79 = arith.mulf %58, %78 : vector<8x1xf32>
    %80 = math.exp %79 : vector<8x1xf32>
    %81 = arith.addf %77, %80 : vector<8x1xf32>
    %cst_41 = arith.constant 1.000000e+01 : f32
    %82 = vector.broadcast %cst_41 : f32 to vector<8x1xf32>
    %83 = arith.mulf %67, %82 : vector<8x1xf32>
    %84 = math.exp %83 : vector<8x1xf32>
    %cst_42 = arith.constant 1.000000e+01 : f32
    %85 = vector.broadcast %cst_42 : f32 to vector<8x1xf32>
    %86 = arith.mulf %70, %85 : vector<8x1xf32>
    %87 = math.exp %86 : vector<8x1xf32>
    %88 = arith.addf %84, %87 : vector<8x1xf32>
    %cst_43 = arith.constant 1.000000e+01 : f32
    %89 = vector.broadcast %cst_43 : f32 to vector<8x1xf32>
    %90 = arith.mulf %58, %89 : vector<8x1xf32>
    %91 = math.exp %90 : vector<8x1xf32>
    %92 = arith.addf %88, %91 : vector<8x1xf32>
    %93 = vector.extract_strided_slice %55 {offsets = [0, 0], sizes = [8, 1], strides = [1, 1]} : vector<16x1xf32> to vector<8x1xf32>
    %94 = math.log %93 : vector<8x1xf32>
    %95 = math.log %81 : vector<8x1xf32>
    %96 = arith.subf %94, %95 : vector<8x1xf32>
    %97 = vector.extract_strided_slice %55 {offsets = [8, 0], sizes = [8, 1], strides = [1, 1]} : vector<16x1xf32> to vector<8x1xf32>
    %98 = math.log %97 : vector<8x1xf32>
    %99 = math.log %92 : vector<8x1xf32>
    %100 = arith.subf %98, %99 : vector<8x1xf32>
    %101 = vector.shape_cast %96 : vector<8x1xf32> to vector<1x8x1xf32>
    %cst_44 = arith.constant dense<0.000000e+00> : vector<1xf32>
    %102 = vector.multi_reduction <add>, %101, %cst_44 [1, 2] : vector<1x8x1xf32> to vector<1xf32>
    %103 = vector.shape_cast %102 : vector<1xf32> to vector<1x1x1xf32>
    %104 = vector.extract %103[0, 0, 0] : f32 from vector<1x1x1xf32>
    %105 = vector.shape_cast %100 : vector<8x1xf32> to vector<1x8x1xf32>
    %cst_45 = arith.constant dense<0.000000e+00> : vector<1xf32>
    %106 = vector.multi_reduction <add>, %105, %cst_45 [1, 2] : vector<1x8x1xf32> to vector<1xf32>
    %107 = vector.shape_cast %106 : vector<1xf32> to vector<1x1x1xf32>
    %108 = vector.extract %107[0, 0, 0] : f32 from vector<1x1x1xf32>
    %109 = arith.addf %104, %108 : f32
    %cst_46 = arith.constant 1.600000e+01 : f32
    %110 = arith.divf %109, %cst_46 : f32
    %cst_47 = arith.constant 1.000000e+00 : f32
    %111 = vector.broadcast %cst_47 : f32 to vector<8x1xf32>
    %112 = arith.subf %111, %36 : vector<8x1xf32>
    %113 = arith.mulf %36, %36 : vector<8x1xf32>
    %cst_48 = arith.constant 1.000000e+00 : f32
    %114 = vector.broadcast %cst_48 : f32 to vector<8x1xf32>
    %115 = arith.addf %114, %113 : vector<8x1xf32>
    %116 = arith.mulf %112, %112 : vector<8x1xf32>
    %117 = arith.addf %115, %116 : vector<8x1xf32>
    %cst_49 = arith.constant 2.000000e+00 : f32
    %118 = vector.broadcast %cst_49 : f32 to vector<8x1xf32>
    %119 = arith.mulf %118, %36 : vector<8x1xf32>
    %120 = arith.mulf %119, %112 : vector<8x1xf32>
    %121 = arith.mulf %120, %58 : vector<8x1xf32>
    %122 = arith.addf %117, %121 : vector<8x1xf32>
    %cst_50 = arith.constant 2.000000e+00 : f32
    %123 = vector.broadcast %cst_50 : f32 to vector<8x1xf32>
    %124 = arith.mulf %123, %36 : vector<8x1xf32>
    %125 = arith.mulf %124, %61 : vector<8x1xf32>
    %126 = arith.subf %122, %125 : vector<8x1xf32>
    %cst_51 = arith.constant 2.000000e+00 : f32
    %127 = vector.broadcast %cst_51 : f32 to vector<8x1xf32>
    %128 = arith.mulf %127, %112 : vector<8x1xf32>
    %129 = arith.mulf %128, %67 : vector<8x1xf32>
    %130 = arith.subf %126, %129 : vector<8x1xf32>
    %131 = arith.mulf %112, %112 : vector<8x1xf32>
    %cst_52 = arith.constant 1.000000e+00 : f32
    %132 = vector.broadcast %cst_52 : f32 to vector<8x1xf32>
    %133 = arith.addf %132, %131 : vector<8x1xf32>
    %134 = arith.mulf %36, %36 : vector<8x1xf32>
    %135 = arith.addf %133, %134 : vector<8x1xf32>
    %cst_53 = arith.constant 2.000000e+00 : f32
    %136 = vector.broadcast %cst_53 : f32 to vector<8x1xf32>
    %137 = arith.mulf %136, %36 : vector<8x1xf32>
    %138 = arith.mulf %137, %112 : vector<8x1xf32>
    %139 = arith.mulf %138, %58 : vector<8x1xf32>
    %140 = arith.addf %135, %139 : vector<8x1xf32>
    %cst_54 = arith.constant 2.000000e+00 : f32
    %141 = vector.broadcast %cst_54 : f32 to vector<8x1xf32>
    %142 = arith.mulf %141, %112 : vector<8x1xf32>
    %143 = arith.mulf %142, %64 : vector<8x1xf32>
    %144 = arith.subf %140, %143 : vector<8x1xf32>
    %cst_55 = arith.constant 2.000000e+00 : f32
    %145 = vector.broadcast %cst_55 : f32 to vector<8x1xf32>
    %146 = arith.mulf %145, %36 : vector<8x1xf32>
    %147 = arith.mulf %146, %70 : vector<8x1xf32>
    %148 = arith.subf %144, %147 : vector<8x1xf32>
    %cst_56 = arith.constant 0.000000e+00 : f32
    %149 = vector.broadcast %cst_56 : f32 to vector<8x1xf32>
    %150 = arith.maximumf %130, %149 : vector<8x1xf32>
    %151 = math.sqrt %150 : vector<8x1xf32>
    %cst_57 = arith.constant 0.000000e+00 : f32
    %152 = vector.broadcast %cst_57 : f32 to vector<8x1xf32>
    %153 = arith.maximumf %148, %152 : vector<8x1xf32>
    %154 = math.sqrt %153 : vector<8x1xf32>
    %155 = arith.addf %151, %154 : vector<8x1xf32>
    %156 = vector.shape_cast %155 : vector<8x1xf32> to vector<1x8x1xf32>
    %cst_58 = arith.constant dense<0.000000e+00> : vector<1xf32>
    %157 = vector.multi_reduction <add>, %156, %cst_58 [1, 2] : vector<1x8x1xf32> to vector<1xf32>
    %158 = vector.shape_cast %157 : vector<1xf32> to vector<1x1x1xf32>
    %159 = vector.extract %158[0, 0, 0] : f32 from vector<1x1x1xf32>
    %cst_59 = arith.constant 8.000000e+00 : f32
    %160 = arith.divf %159, %cst_59 : f32
    %c0_60 = arith.constant 0 : index
    %c0_61 = arith.constant 0 : index
    %161 = memref.load %arg5[%c0_60, %c0_61] : memref<1x1xf32, #tpu.memory_space<smem>>
    memref.store %110, %arg5[%c0_60, %c0_61] : memref<1x1xf32, #tpu.memory_space<smem>>
    %c0_62 = arith.constant 0 : index
    %c0_63 = arith.constant 0 : index
    %162 = memref.load %arg6[%c0_62, %c0_63] : memref<1x1xf32, #tpu.memory_space<smem>>
    memref.store %160, %arg6[%c0_62, %c0_63] : memref<1x1xf32, #tpu.memory_space<smem>>
    %cst_64 = arith.constant 5.000000e-01 : f32
    %163 = arith.mulf %cst_64, %160 : f32
    %164 = arith.addf %110, %163 : f32
    %c0_65 = arith.constant 0 : index
    %c0_66 = arith.constant 0 : index
    %165 = memref.load %arg7[%c0_65, %c0_66] : memref<1x1xf32, #tpu.memory_space<smem>>
    memref.store %164, %arg7[%c0_65, %c0_66] : memref<1x1xf32, #tpu.memory_space<smem>>
    return
  }
}

</mosaic_0001>

<llo_original>
// kernel: refined_code_switch_loss.1
$region0: #{refined_code_switch_loss.1}
  #allocation0 [shape = 'u32[]', space=smem, size = 0x4, offset = 0x4, fixed_abs, tag = 'smem constant byte address 0x4 - core index']
  #allocation1 [shape = 'u32[144,128]{1,0:T(1,128)}', space=vmem, size = 0x12000, scoped, tag = 'internal scratch']
  #allocation2 [shape = 'f32[16,128]{1,0:T(8,128)}', space=vmem, size = 0x2000, scoped, tag = 'scratch operand']
  #allocation3 [shape = 'f32[32,128]{1,0:T(8,128)}', space=vmem, size = 0x4000, scoped, tag = 'scratch operand']
  %s0 = inlined_call_operand.vmem [shape: f32[8,128], index: 0, kind: input, shape index: {}]
  %s1 = inlined_call_operand.vmem [shape: f32[8,128], index: 1, kind: input, shape index: {}]
  %s2 = inlined_call_operand.vmem [shape: f32[8,128], index: 2, kind: input, shape index: {}]
  %s3 = inlined_call_operand.hbm [shape: f32[8,128], index: 3, kind: input, shape index: {}]
  %s4 = inlined_call_operand.vmem [shape: f32[8,1], index: 4, kind: input, shape index: {}]
  %s5 = inlined_call_operand.hbm [shape: f32[1,1], index: 5, kind: output, shape index: {0}]
  %s6 = inlined_call_operand.hbm [shape: f32[1,1], index: 6, kind: output, shape index: {1}]
  %s7 = inlined_call_operand.hbm [shape: f32[1,1], index: 7, kind: output, shape index: {2}]
  %8 = xla_tuple %s5, %s6, %s7
  %s9 = sld [smem:[#allocation0]]
  $region50: #{refined_code_switch_loss.1} parent=0
    _
  %s11 = ssub.s32 1, %s9
  %s12 = scalar_select 0, %s11, %s9
  $region1: #{refined_code_switch_loss.1} parent=0
    #allocation4 [shape = 'u8[4096]{0}', space=vmem, size = 0x1000, scoped, tag = 'input window, operand 3, single buffered']
    #allocation5 [shape = 's32[1]{0}', space=sflag, size = 0x4, scoped, tag = 'scoped memory for refined_code_switch_loss.1']
    #allocation6 [shape = 's32[1]{0}', space=sflag, size = 0x4, scoped, tag = 'scoped memory for refined_code_switch_loss.1']
    #allocation7 [shape = 'u8[512]{0}', space=smem, size = 0x200, scoped, tag = 'output window, operand 0, single buffered']
    #allocation8 [shape = 'u8[512]{0}', space=smem, size = 0x200, scoped, tag = 'output window, operand 1, single buffered']
    #allocation9 [shape = 's32[1]{0}', space=sflag, size = 0x4, scoped, tag = 'scoped memory for refined_code_switch_loss.1']
    #allocation10 [shape = 'u8[512]{0}', space=smem, size = 0x200, scoped, tag = 'output window, operand 2, single buffered']
    %13 = vsyncpa [#allocation5], 0
    %14 = vsyncpa [#allocation6], 0
    %15 = vsyncpa [#allocation9], 0
    // Predicated region
    $region2: #{refined_code_switch_loss.1} parent=1 // pred_check
      _
    $region3: #{refined_code_switch_loss.1} parent=1 // pred_check_branch
      %17 = sbr.rel (0) target = $region5
    $region4: #{refined_code_switch_loss.1} parent=1 // pred_region
      _
    $region5: #{refined_code_switch_loss.1} parent=1 // pred_fallthru
      _
    // Predicated region
    $region6: #{refined_code_switch_loss.1} parent=1 // pred_check
      _
    $region7: #{refined_code_switch_loss.1} parent=1 // pred_check_branch
      %19 = sbr.rel (0) target = $region9
    $region8: #{refined_code_switch_loss.1} parent=1 // pred_region
      _
    $region9: #{refined_code_switch_loss.1} parent=1 // pred_fallthru
      _
    // Predicated region
    $region10: #{refined_code_switch_loss.1} parent=1 // pred_check
      _
    $region11: #{refined_code_switch_loss.1} parent=1 // pred_check_branch
      %21 = sbr.rel (0) target = $region13
    $region12: #{refined_code_switch_loss.1} parent=1 // pred_region
      _
    $region13: #{refined_code_switch_loss.1} parent=1 // pred_fallthru
      _
    // Predicated region
    $region14: #{refined_code_switch_loss.1} parent=1 // pred_check
      _
    $region15: #{refined_code_switch_loss.1} parent=1 // pred_check_branch
      %23 = sbr.rel (0) target = $region17
    $region16: #{refined_code_switch_loss.1} parent=1 // pred_region
      %s25 = ssub.s32 128, 128
      %26 = vsyncadd [#allocation5], %s25
      %s28 = sshll.u32 [#allocation4], 4
      %s29 = int_to_ptr.vmem [resolvable:$true] %s28
      %31 = dma.hbm_to_vmem [thread:$0]  %s3, 128, %s29, [#allocation5]
    $region17: #{refined_code_switch_loss.1} parent=1 // pred_fallthru
      _
    // Predicated region
    $region18: #{refined_code_switch_loss.1} parent=1 // pred_check
      _
    $region19: #{refined_code_switch_loss.1} parent=1 // pred_check_branch
      %33 = sbr.rel (0) target = $region21
    $region20: #{refined_code_switch_loss.1} parent=1 // pred_region
      _
    $region21: #{refined_code_switch_loss.1} parent=1 // pred_fallthru
      _
    // Predicated region
    $region22: #{refined_code_switch_loss.1} parent=1 // pred_check
      _
    $region23: #{refined_code_switch_loss.1} parent=1 // pred_check_branch
      %35 = sbr.rel (0) target = $region25
    $region24: #{refined_code_switch_loss.1} parent=1 // pred_region
      %36 = dma.done [#allocation5], 128
    $region25: #{refined_code_switch_loss.1} parent=1 // pred_fallthru
      _
    %v37 = vld [vmem:[%s0] sm:$0xff]
    %v38 = vmul.f32 %v37, %v37
    %39 = vadd.xlane.f32.xlu0 %v38
    %v40 = vpop.xlane.xlu0 %39
    %v41 = vrsqrt.pop %v40
    %v42 = vmul.f32 %v40, %v41
    %vm43 = vcmp.eq.f32.partialorder %v40, inf
    %v44 = vsel %vm43, %v40, %v42
    %vm45 = vcmp.eq.f32.partialorder %v40, 0.0
    %v46 = vand.u32 %v40, 2147483648
    %v47 = vsel %vm45, %v46, %v44
    %v48 = vmax.f32 %v47, 1e-12
    %v49 = vrcp.pop %v48
    %v50 = vmul.f32 %v37, %v49
    %v51 = vld [vmem:[%s1] sm:$0xff]
    %v52 = vmul.f32 %v51, %v51
    %53 = vadd.xlane.f32.xlu0 %v52
    %v54 = vpop.xlane.xlu0 %53
    %v55 = vrsqrt.pop %v54
    %v56 = vmul.f32 %v54, %v55
    %vm57 = vcmp.eq.f32.partialorder %v54, inf
    %v58 = vsel %vm57, %v54, %v56
    %vm59 = vcmp.eq.f32.partialorder %v54, 0.0
    %v60 = vand.u32 %v54, 2147483648
    %v61 = vsel %vm59, %v60, %v58
    %v62 = vmax.f32 %v61, 1e-12
    %v63 = vrcp.pop %v62
    %v64 = vmul.f32 %v51, %v63
    %v65 = vld [vmem:[%s2] sm:$0xff]
    %v66 = vmul.f32 %v65, %v65
    %67 = vadd.xlane.f32.xlu0 %v66
    %v68 = vpop.xlane.xlu0 %67
    %v69 = vrsqrt.pop %v68
    %v70 = vmul.f32 %v68, %v69
    %vm71 = vcmp.eq.f32.partialorder %v68, inf
    %v72 = vsel %vm71, %v68, %v70
    %vm73 = vcmp.eq.f32.partialorder %v68, 0.0
    %v74 = vand.u32 %v68, 2147483648
    %v75 = vsel %vm73, %v74, %v72
    %v76 = vmax.f32 %v75, 1e-12
    %v77 = vrcp.pop %v76
    %v78 = vmul.f32 %v65, %v77
    %v79 = vld [vmem:[#allocation4] sm:$0xff]
    %v80 = vmul.f32 %v79, %v79
    %81 = vadd.xlane.f32.xlu0 %v80
    %v82 = vpop.xlane.xlu0 %81
    %v83 = vrsqrt.pop %v82
    %v84 = vmul.f32 %v82, %v83
    %vm85 = vcmp.eq.f32.partialorder %v82, inf
    %v86 = vsel %vm85, %v82, %v84
    %vm87 = vcmp.eq.f32.partialorder %v82, 0.0
    %v88 = vand.u32 %v82, 2147483648
    %v89 = vsel %vm87, %v88, %v86
    %v90 = vmax.f32 %v89, 1e-12
    %v91 = vrcp.pop %v90
    %v92 = vmul.f32 %v79, %v91
    %v93 = vld [vmem:[%s4] sm:$0xff]
    %94 = vst [vmem:[#allocation2] sm:$0xff] %v50
    %95 = vst [vmem:[#allocation2 + $0x8] sm:$0xff] %v92
    %96 = vst [vmem:[#allocation3] sm:$0xff] %v50
    %97 = vst [vmem:[#allocation3 + $0x8] sm:$0xff] %v92
    %98 = vst [vmem:[#allocation3 + $0x10] sm:$0xff] %v64
    %99 = vst [vmem:[#allocation3 + $0x18] sm:$0xff] %v78
    %v100 = vld [vmem:[#allocation2] sm:$0xff]
    %v101 = vld [vmem:[#allocation2 + $0x8] sm:$0xff]
    %v102 = vld [vmem:[#allocation3] sm:$0xff]
    %v103 = vld [vmem:[#allocation3 + $0x8] sm:$0xff]
    %v104 = vld [vmem:[#allocation3 + $0x10] sm:$0xff]
    %v105 = vld [vmem:[#allocation3 + $0x18] sm:$0xff]
    %106 = vmatprep.subr.mxu0 0.0
    %107 = vmatpush1.xpose.msra.mxu0 %v102
    %108 = vmatprep.subr.mxu0 0.0
    %109 = vmatpush1.xpose.msra.mxu0 %v103
    %110 = vmatprep.subr.mxu0 0.0
    %111 = vmatpush1.xpose.msra.mxu0 %v104
    %112 = vmatprep.subr.mxu0 0.0
    %113 = vmatpush1.xpose.msra.mxu0 %v105
    %114 = vmatprep.subr.mxu0 0.0
    %115 = vmatpush1.xpose.msra.mxu0 0.0
    %116 = vmatprep.subr.mxu0 0.0
    %117 = vmatpush1.xpose.msra.mxu0 0.0
    %118 = vmatprep.subr.mxu0 0.0
    %119 = vmatpush1.xpose.msra.mxu0 0.0
    %120 = vmatprep.subr.mxu0 0.0
    %121 = vmatpush1.xpose.msra.mxu0 0.0
    %122 = vmatprep.subr.mxu0 0.0
    %123 = vmatpush1.xpose.msra.mxu0 0.0
    %124 = vmatprep.subr.mxu0 0.0
    %125 = vmatpush1.xpose.msra.mxu0 0.0
    %126 = vmatprep.subr.mxu0 0.0
    %127 = vmatpush1.xpose.msra.mxu0 0.0
    %128 = vmatprep.subr.mxu0 0.0
    %129 = vmatpush1.xpose.msra.mxu0 0.0
    %130 = vmatprep.subr.mxu0 0.0
    %131 = vmatpush1.xpose.msra.mxu0 0.0
    %132 = vmatprep.subr.mxu0 0.0
    %133 = vmatpush1.xpose.msra.mxu0 0.0
    %134 = vmatprep.subr.mxu0 0.0
    %135 = vmatpush1.xpose.msra.mxu0 0.0
    %136 = vmatprep.subr.mxu0 0.0
    %137 = vmatpush1.xpose.msra.mxu0 0.0
    %138 = vmatprep.subr.mxu0 0.0
    %139 = vmatpush1.xpose.msra.mxu0 0.0
    %140 = vmatprep.subr.mxu0 0.0
    %141 = vmatpush1.xpose.msra.mxu0 0.0
    %142 = vmatprep.subr.mxu0 0.0
    %143 = vmatpush1.xpose.msra.mxu0 0.0
    %144 = vmatprep.subr.mxu0 0.0
    %145 = vmatpush1.xpose.msra.mxu0 0.0
    %146 = vmatprep.subr.mxu0 0.0
    %147 = vmatpush1.xpose.msra.mxu0 0.0
    %148 = vmatprep.subr.mxu0 0.0
    %149 = vmatpush1.xpose.msra.mxu0 0.0
    %150 = vmatprep.subr.mxu0 0.0
    %151 = vmatpush1.xpose.msra.mxu0 0.0
    %152 = vmatprep.subr.mxu0 0.0
    %153 = vmatpush1.xpose.msra.mxu0 0.0
    %154 = vmatprep.subr.mxu0 0.0
    %155 = vmatpush1.xpose.msra.mxu0 0.0
    %156 = vmatprep.subr.mxu0 0.0
    %157 = vmatpush1.xpose.msra.mxu0 0.0
    %158 = vmatprep.subr.mxu0 0.0
    %159 = vmatpush1.xpose.msra.mxu0 0.0
    %160 = vmatprep.subr.mxu0 0.0
    %161 = vmatpush1.xpose.msra.mxu0 0.0
    %162 = vmatprep.subr.mxu0 0.0
    %163 = vmatpush1.xpose.msra.mxu0 0.0
    %164 = vmatprep.subr.mxu0 0.0
    %165 = vmatpush1.xpose.msra.mxu0 0.0
    %166 = vmatprep.subr.mxu0 0.0
    %167 = vmatpush1.xpose.msra.mxu0 0.0
    %168 = vmatprep.subr.mxu0 0.0
    %169 = vmatpush1.xpose.msra.mxu0 0.0
    %170 = vmatprep.mubr.f32.mxu0 0.0
    %171 = vmatmul.mubr.f32.gmra.mrb[0].mxu0 %v100
    %v172 = vpop.f32.mrb[0].mxu0
    %v173 = vadd.f32 0.0, %v172
    %v174 = vpop.f32.mrb[0].mxu0
    %175 = vmatprep.mubr.f32.mxu0 0.0
    %176 = vmatmul.mubr.f32.gmra.mrb[0].mxu0 %v101
    %v177 = vpop.f32.mrb[0].mxu0
    %v178 = vadd.f32 0.0, %v177
    %v179 = vpop.f32.mrb[0].mxu0
    %180 = vdwg.mxu0
    %v181 = vmul.f32 %v173, 10.0
    %v182 = vmul.f32 %v178, 10.0
    %v183 = vlaneseq
    %v184 = vshrl.u32 %v183, 7
    %v185 = vadd.s32 %v184, 8
    %v186 = vlaneseq
    %v187 = vand.u32 %v186, 127
    %vm188 = vcmp.eq.s32.totalorder %v184, %v187
    %vm189 = vcmp.eq.s32.totalorder %v185, %v187
    %v190 = vmul.f32 %v181, 1.442695
    %v191 = vpow.pop %v190
    %v192 = vmul.f32 %v182, 1.442695
    %v193 = vpow.pop %v192
    %v194 = vsel %vm188, 0.0, %v191
    %v195 = vsel %vm189, 0.0, %v193
    %vm196 = vcmask 261120
    %v197 = vsel %vm196, %v194, 0.0
    %198 = vadd.xlane.f32.xlu0 %v197
    %v199 = vpop.xlane.xlu0 %198
    %v200 = vsel %vm196, %v195, 0.0
    %201 = vadd.xlane.f32.xlu0 %v200
    %v202 = vpop.xlane.xlu0 %201
    %v203 = vmul.f32 %v50, %v92
    %204 = vadd.xlane.f32.xlu0 %v203
    %v205 = vpop.xlane.xlu0 %204
    %v206 = vmul.f32 %v50, %v64
    %207 = vadd.xlane.f32.xlu0 %v206
    %v208 = vpop.xlane.xlu0 %207
    %v209 = vmul.f32 %v50, %v78
    %210 = vadd.xlane.f32.xlu0 %v209
    %v211 = vpop.xlane.xlu0 %210
    %v212 = vmul.f32 %v92, %v64
    %213 = vadd.xlane.f32.xlu0 %v212
    %v214 = vpop.xlane.xlu0 %213
    %v215 = vmul.f32 %v92, %v78
    %216 = vadd.xlane.f32.xlu0 %v215
    %v217 = vpop.xlane.xlu0 %216
    %v218 = vmul.f32 %v208, 10.0
    %v219 = vmul.f32 %v218, 1.442695
    %v220 = vpow.pop %v219
    %v221 = vmul.f32 %v211, 10.0
    %v222 = vmul.f32 %v221, 1.442695
    %v223 = vpow.pop %v222
    %v224 = vadd.f32 %v220, %v223
    %v225 = vmul.f32 %v205, 10.0
    %v226 = vmul.f32 %v225, 1.442695
    %v227 = vpow.pop %v226
    %v228 = vadd.f32 %v224, %v227
    %v229 = vmul.f32 %v214, 10.0
    %v230 = vmul.f32 %v229, 1.442695
    %v231 = vpow.pop %v230
    %v232 = vmul.f32 %v217, 10.0
    %v233 = vmul.f32 %v232, 1.442695
    %v234 = vpow.pop %v233
    %v235 = vadd.f32 %v231, %v234
    %v236 = vadd.f32 %v235, %v227
    %v237 = vlog2.pop %v199
    %v238 = vmul.f32 %v237, 0.6931472
    %v239 = vlog2.pop %v228
    %v240 = vmul.f32 %v239, 0.6931472
    %v241 = vsub.f32 %v238, %v240
    %v242 = vlog2.pop %v202
    %v243 = vmul.f32 %v242, 0.6931472
    %v244 = vlog2.pop %v236
    %v245 = vmul.f32 %v244, 0.6931472
    %v246 = vsub.f32 %v243, %v245
    %vm247 = vcmask 7168
    %v248 = vsel %vm247, %v241, 0.0
    %249 = vadd.xlane.f32.xlu0 %v248
    %v250 = vpop.xlane.xlu0 %249
    %v251 = vrot.slane %v250, 4
    %v252 = vadd.f32 %v250, %v251
    %v253 = vrot.slane %v252, 2
    %v254 = vadd.f32 %v252, %v253
    %v255 = vrot.slane %v254, 1
    %v256 = vadd.f32 %v254, %v255
    %s257 = vtos %v256
    %v258 = vsel %vm247, %v246, 0.0
    %259 = vadd.xlane.f32.xlu0 %v258
    %v260 = vpop.xlane.xlu0 %259
    %v261 = vrot.slane %v260, 4
    %v262 = vadd.f32 %v260, %v261
    %v263 = vrot.slane %v262, 2
    %v264 = vadd.f32 %v262, %v263
    %v265 = vrot.slane %v264, 1
    %v266 = vadd.f32 %v264, %v265
    %s267 = vtos %v266
    %s268 = sadd.f32 %s257, %s267
    %v269 = vrcp.pop 16.0
    %s270 = vtos %v269
    %s271 = smul.f32 %s268, %s270
    %v272 = vsub.f32 1.0, %v93
    %v273 = vmul.f32 %v93, %v93
    %v274 = vadd.f32 %v273, 1.0
    %v275 = vmul.f32 %v272, %v272
    %v276 = vadd.f32 %v274, %v275
    %v277 = vmul.f32 %v93, 2.0
    %v278 = vmul.f32 %v277, %v272
    %v279 = vmul.f32 %v278, %v205
    %v280 = vadd.f32 %v276, %v279
    %v281 = vmul.f32 %v277, %v208
    %v282 = vsub.f32 %v280, %v281
    %v283 = vmul.f32 %v272, 2.0
    %v284 = vmul.f32 %v283, %v214
    %v285 = vsub.f32 %v282, %v284
    %v286 = vadd.f32 %v275, 1.0
    %v287 = vadd.f32 %v286, %v273
    %v288 = vadd.f32 %v287, %v279
    %v289 = vmul.f32 %v283, %v211
    %v290 = vsub.f32 %v288, %v289
    %v291 = vmul.f32 %v277, %v217
    %v292 = vsub.f32 %v290, %v291
    %v293 = vmax.f32 %v285, 0.0
    %v294 = vrsqrt.pop %v293
    %v295 = vmul.f32 %v293, %v294
    %vm296 = vcmp.eq.f32.partialorder %v293, inf
    %v297 = vsel %vm296, %v293, %v295
    %vm298 = vcmp.eq.f32.partialorder %v293, 0.0
    %v299 = vand.u32 %v293, 2147483648
    %v300 = vsel %vm298, %v299, %v297
    %v301 = vmax.f32 %v292, 0.0
    %v302 = vrsqrt.pop %v301
    %v303 = vmul.f32 %v301, %v302
    %vm304 = vcmp.eq.f32.partialorder %v301, inf
    %v305 = vsel %vm304, %v301, %v303
    %vm306 = vcmp.eq.f32.partialorder %v301, 0.0
    %v307 = vand.u32 %v301, 2147483648
    %v308 = vsel %vm306, %v307, %v305
    %v309 = vadd.f32 %v300, %v308
    %v310 = vsel %vm247, %v309, 0.0
    %311 = vadd.xlane.f32.xlu0 %v310
    %v312 = vpop.xlane.xlu0 %311
    %v313 = vrot.slane %v312, 4
    %v314 = vadd.f32 %v312, %v313
    %v315 = vrot.slane %v314, 2
    %v316 = vadd.f32 %v314, %v315
    %v317 = vrot.slane %v316, 1
    %v318 = vadd.f32 %v316, %v317
    %s319 = vtos %v318
    %v320 = vrcp.pop 8.0
    %s321 = vtos %v320
    %s322 = smul.f32 %s319, %s321
    %s323 = scalar_lea.smem [#allocation7], 0
    %324 = sst [smem:[%s323]] %s271
    %s325 = scalar_lea.smem [#allocation8], 0
    %326 = sst [smem:[%s325]] %s322
    %s327 = smul.f32 %s322, 0.5
    %s328 = sadd.f32 %s271, %s327
    %s329 = scalar_lea.smem [#allocation10], 0
    %330 = sst [smem:[%s329]] %s328
    // Predicated region
    $region26: #{refined_code_switch_loss.1} parent=1 // pred_check
      _
    $region27: #{refined_code_switch_loss.1} parent=1 // pred_check_branch
      %332 = sbr.rel (0) target = $region29
    $region28: #{refined_code_switch_loss.1} parent=1 // pred_region
      %s334 = ssub.s32 16, 16
      %335 = vsyncadd [#allocation6], %s334
      %338 = dma.smem_to_hbm [#allocation7], 16, %s5, [#allocation6]
    $region29: #{refined_code_switch_loss.1} parent=1 // pred_fallthru
      _
    // Predicated region
    $region30: #{refined_code_switch_loss.1} parent=1 // pred_check
      _
    $region31: #{refined_code_switch_loss.1} parent=1 // pred_check_branch
      %340 = sbr.rel (0) target = $region33
    $region32: #{refined_code_switch_loss.1} parent=1 // pred_region
      %s342 = ssub.s32 16, 16
      %343 = vsyncadd [#allocation9], %s342
      %346 = dma.smem_to_hbm [#allocation8], 16, %s6, [#allocation9]
    $region33: #{refined_code_switch_loss.1} parent=1 // pred_fallthru
      _
    // Predicated region
    $region34: #{refined_code_switch_loss.1} parent=1 // pred_check
      _
    $region35: #{refined_code_switch_loss.1} parent=1 // pred_check_branch
      %348 = sbr.rel (0) target = $region37
    $region36: #{refined_code_switch_loss.1} parent=1 // pred_region
      %s350 = ssub.s32 16, 16
      %351 = vsyncadd [#allocation9], %s350
      %354 = dma.smem_to_hbm [#allocation10], 16, %s7, [#allocation9]
    $region37: #{refined_code_switch_loss.1} parent=1 // pred_fallthru
      _
    // Predicated region
    $region38: #{refined_code_switch_loss.1} parent=1 // pred_check
      _
    $region39: #{refined_code_switch_loss.1} parent=1 // pred_check_branch
      %356 = sbr.rel (0) target = $region41
    $region40: #{refined_code_switch_loss.1} parent=1 // pred_region
      %357 = dma.done [#allocation6], 16
    $region41: #{refined_code_switch_loss.1} parent=1 // pred_fallthru
      _
    // Predicated region
    $region42: #{refined_code_switch_loss.1} parent=1 // pred_check
      _
    $region43: #{refined_code_switch_loss.1} parent=1 // pred_check_branch
      %359 = sbr.rel (0) target = $region45
    $region44: #{refined_code_switch_loss.1} parent=1 // pred_region
      %360 = dma.done [#allocation9], 16
    $region45: #{refined_code_switch_loss.1} parent=1 // pred_fallthru
      _
    // Predicated region
    $region46: #{refined_code_switch_loss.1} parent=1 // pred_check
      _
    $region47: #{refined_code_switch_loss.1} parent=1 // pred_check_branch
      %362 = sbr.rel (0) target = $region49
    $region48: #{refined_code_switch_loss.1} parent=1 // pred_region
      %363 = dma.done [#allocation9], 16
    $region49: #{refined_code_switch_loss.1} parent=1 // pred_fallthru
      _
    %364 = sfence
    %365 = vsyncpa [#allocation5], 1
    %366 = vsyncpa [#allocation6], 1
    %367 = vsyncpa [#allocation9], 1

</llo_original>
